<compile_context>
chip_gen: v5e
topology: v5e:2x2
jax: 0.10.0
libtpu: 0.0.40
codegen_flags: <defaults>
</compile_context>

<pallas_src>
import functools

import jax
import jax.numpy as jnp
import numpy as np
from jax.experimental import pallas as pl
from jax.experimental.pallas import tpu as pltpu


# --------------------------------------------------------------------------
# Pallas kernel 1: fused 1x1 conv (row-tiled matmul) + folded BN + ReLU
# --------------------------------------------------------------------------
def _pointwise_kernel(x_ref, w_ref, scale_ref, bias_ref, o_ref, *, relu,
                      matmul_dtype):
    # Cast inside the kernel (no extra HBM pass outside the pipeline).
    x = x_ref[...].astype(matmul_dtype)
    y = jnp.dot(x, w_ref[...], preferred_element_type=jnp.float32)
    y = y * scale_ref[...] + bias_ref[...]
    if relu:
        y = jnp.maximum(y, 0.0)
    o_ref[...] = y.astype(o_ref.dtype)


def pointwise_conv(x2d, w, scale, bias, *, relu, block_rows=512,
                   matmul_dtype=jnp.float32, out_dtype=jnp.float32):
    """Fused 1x1 conv + per-channel affine (+ReLU) over (N, Cin) rows.

    Row axis is tiled and marked "parallel" (double-buffered DMA, megacore
    shardable).  The last block may be ragged; Pallas masks its writeback, and
    rows are independent, so no wrapper-side padding is needed.
    """
    N, Cin = x2d.shape
    Cout = w.shape[1]
    block_rows = max(8, (block_rows // 8) * 8)        # sublane-aligned tiles
    tile = N if N <= block_rows else block_rows
    num_tiles = pl.cdiv(N, tile)                      # ragged last block OK

    kernel = functools.partial(_pointwise_kernel, relu=relu,
                               matmul_dtype=matmul_dtype)
    # TODO(synk): pipeline_mode=pl.Buffered(1) on the grid-invariant weight /
    # scale / bias specs would single-buffer them (matters for Cout >= 1024
    # under v5e's 16 MiB scoped VMEM and v7x's 64 MiB physical VMEM).
    grid_spec = pltpu.PrefetchScalarGridSpec(
        num_scalar_prefetch=0,
        grid=(num_tiles,),
        in_specs=[
            pl.BlockSpec((tile, Cin), lambda i: (i, 0)),
            pl.BlockSpec((Cin, Cout), lambda i: (0, 0)),
            pl.BlockSpec((1, Cout), lambda i: (0, 0)),
            pl.BlockSpec((1, Cout), lambda i: (0, 0)),
        ],
        out_specs=pl.BlockSpec((tile, Cout), lambda i: (i, 0)),
    )
    cost = pl.CostEstimate(
        flops=int(2 * N * Cin * Cout + 3 * N * Cout),
        transcendentals=0,
        bytes_accessed=int(N * Cin * x2d.dtype.itemsize
                           + Cin * Cout * jnp.dtype(matmul_dtype).itemsize
                           + N * Cout * jnp.dtype(out_dtype).itemsize),
    )
    return pl.pallas_call(
        kernel,
        out_shape=jax.ShapeDtypeStruct((N, Cout), out_dtype),
        grid_spec=grid_spec,
        compiler_params=pltpu.CompilerParams(dimension_semantics=("parallel",)),
        cost_estimate=cost,
    )(x2d,
      w.astype(matmul_dtype),
      scale.reshape(1, Cout).astype(jnp.float32),
      bias.reshape(1, Cout).astype(jnp.float32))


# --------------------------------------------------------------------------
# Pallas kernel 2: dynamic depthwise conv (channels-last) + folded BN + ReLU
# --------------------------------------------------------------------------
def _dyn_dw_kernel(x_ref, filt_ref, scale_ref, bias_ref, o_ref, xpad_ref, *,
                   fs, H, W, pt, pb, plft, prt, lpad):
    C = o_ref.shape[-1]
    Hp = pt + H + pb
    Wp = lpad + W + prt

    # Build the zero halo in VMEM: zero ONLY the border slabs (not the whole
    # scratch), then store the interior once.  lpad is a multiple of 8, so the
    # interior store starts on a sublane boundary (unmasked vst).
    if pt > 0:
        xpad_ref[0:pt, :, :] = jnp.zeros((pt, Wp, C), jnp.float32)
    if pb > 0:
        xpad_ref[pt + H:Hp, :, :] = jnp.zeros((pb, Wp, C), jnp.float32)
    xpad_ref[pt:pt + H, 0:lpad, :] = jnp.zeros((H, lpad, C), jnp.float32)
    if prt > 0:
        xpad_ref[pt:pt + H, lpad + W:Wp, :] = jnp.zeros((H, prt, C), jnp.float32)
    xpad_ref[pt:pt + H, lpad:lpad + W, :] = x_ref[0].astype(jnp.float32)

    base = lpad - plft
    fvals = filt_ref[0].astype(jnp.float32)            # (fs*fs, C)

    def tap(i, j):
        # TODO(synk): if the Mosaic dump shows these sublane-misaligned W
        # slices materializing VMEM copies, switch to pltpu.roll (idle XLU).
        return xpad_ref[i:i + H, base + j:base + j + W, :]

    # Initialize the accumulator with the first tap product (saves one full
    # H*W*C zero materialization + add per grid step in a VALU-bound loop).
    acc = tap(0, 0) * fvals[0]
    for t in range(1, fs * fs):
        # TODO(synk): on v7x (VALU-bound, not HBM-bound) the tap multiply-add
        # could run in packed bf16 for 2x VPU throughput.
        acc = acc + tap(t // fs, t % fs) * fvals[t]

    acc = acc * scale_ref[...] + bias_ref[...]          # folded BN, (1, C) bcast
    o_ref[0] = jnp.maximum(acc, 0.0).astype(o_ref.dtype)


def dynamic_depthwise_cl(xr_cl, filt, scale, bias, *, fs,
                         out_dtype=jnp.float32):
    """Per-(batch, channel) dynamic depthwise conv + BN + ReLU, channels-last.

    xr_cl: (B, H, W, C), filt: (B, fs*fs, C), scale/bias: (C,).
    Grid = (B, channel tiles); both axes "parallel".  Input dtype is whatever
    the previous stage emitted (f32 or bf16); cast to f32 happens in-kernel.
    """
    B, H, W, C = xr_cl.shape
    pad = (fs - 1) // 2
    if (fs - 1) % 2 == 0:
        pt, pb, plft, prt = pad, pad, pad, pad
    else:
        pt, pb, plft, prt = pad + 1, pad, pad + 1, pad
    lpad = max(8, -(-plft // 8) * 8)                    # sublane-aligned halo
    Hp = pt + H + pb
    Wp = lpad + W + prt

    # Lane-dense 128-wide channel tiles for big C, full C otherwise.
    if C > 128:
        tc = 128
        Cp = pl.cdiv(C, tc) * tc
    else:
        tc, Cp = C, C
    if Cp != C:
        cpad = Cp - C
        xr_cl = jnp.pad(xr_cl, ((0, 0), (0, 0), (0, 0), (0, cpad)))
        filt = jnp.pad(filt, ((0, 0), (0, 0), (0, cpad)))
        scale = jnp.pad(scale, (0, cpad))
        bias = jnp.pad(bias, (0, cpad))

    scale2 = scale.reshape(1, Cp).astype(jnp.float32)
    bias2 = bias.reshape(1, Cp).astype(jnp.float32)

    # TODO(synk): spatially tile over H with an (fs-1)-row halo so a block is
    # ~2-4 MiB for very large H*W (v7x: 64 MiB physical VMEM, 2 TensorCores).
    kernel = functools.partial(_dyn_dw_kernel, fs=fs, H=H, W=W,
                               pt=pt, pb=pb, plft=plft, prt=prt, lpad=lpad)
    grid_spec = pltpu.PrefetchScalarGridSpec(
        num_scalar_prefetch=0,
        grid=(B, Cp // tc),
        in_specs=[
            pl.BlockSpec((1, H, W, tc), lambda b, c: (b, 0, 0, c)),
            pl.BlockSpec((1, fs * fs, tc), lambda b, c: (b, 0, c)),
            pl.BlockSpec((1, tc), lambda b, c: (0, c)),
            pl.BlockSpec((1, tc), lambda b, c: (0, c)),
        ],
        out_specs=pl.BlockSpec((1, H, W, tc), lambda b, c: (b, 0, 0, c)),
        scratch_shapes=[pltpu.VMEM((Hp, Wp, tc), jnp.float32)],
    )
    cost = pl.CostEstimate(
        flops=int(B * H * W * Cp * (2 * fs * fs + 3)),
        transcendentals=0,
        bytes_accessed=int(B * H * W * Cp * (xr_cl.dtype.itemsize
                                             + jnp.dtype(out_dtype).itemsize)
                           + B * fs * fs * Cp * filt.dtype.itemsize),
    )
    out = pl.pallas_call(
        kernel,
        out_shape=jax.ShapeDtypeStruct((B, H, W, Cp), out_dtype),
        grid_spec=grid_spec,
        compiler_params=pltpu.CompilerParams(
            dimension_semantics=("parallel", "parallel")),
        cost_estimate=cost,
    )(xr_cl, filt, scale2, bias2)
    if Cp != C:
        out = out[..., :C]
    return out


# --------------------------------------------------------------------------
# Plain-JAX glue (adaptive pooling bins, BN folding, parameter setup)
# --------------------------------------------------------------------------
def adaptive_avg_pool_cl(x_cl, out_size):
    """F.adaptive_avg_pool2d bin semantics, channels-last. x_cl: (B, H, W, C)."""
    B, H, W, C = x_cl.shape
    if H % out_size == 0 and W % out_size == 0:
        # single fused reshape+mean pass (identical bins when divisible)
        return x_cl.reshape(B, out_size, H // out_size,
                            out_size, W // out_size, C).mean(axis=(2, 4))
    rows = []
    for i in range(out_size):
        h0 = (i * H) // out_size
        h1 = -(-((i + 1) * H) // out_size)  # ceil
        cols = []
        for j in range(out_size):
            w0 = (j * W) // out_size
            w1 = -(-((j + 1) * W) // out_size)
            cols.append(jnp.mean(x_cl[:, h0:h1, w0:w1, :], axis=(1, 2)))  # (B, C)
        rows.append(jnp.stack(cols, axis=1))        # (B, fs_w, C)
    return jnp.stack(rows, axis=1)                  # (B, fs, fs, C)


def bn_params(key, c):
    k1, k2, k3, k4 = jax.random.split(key, 4)
    gamma = 1.0 + 0.1 * jax.random.normal(k1, (c,), jnp.float32)
    beta = 0.1 * jax.random.normal(k2, (c,), jnp.float32)
    mean = 0.1 * jax.random.normal(k3, (c,), jnp.float32)
    var = 1.0 + 0.1 * jnp.abs(jax.random.normal(k4, (c,), jnp.float32))
    return gamma, beta, mean, var


def fold_bn(bn, eps=1e-5):
    gamma, beta, mean, var = bn
    scale = gamma / jnp.sqrt(var + eps)
    bias = beta - mean * scale
    return scale, bias


def init_params(key, in_channels, out_channels, is_fusion):
    ks = jax.random.split(key, 8)
    p = {
        "filter_gen_w": 0.1 * jax.random.normal(ks[0], (out_channels, in_channels), jnp.float32),
        "filter_gen_b": 0.1 * jax.random.normal(ks[1], (out_channels,), jnp.float32),
        "redu_w": 0.1 * jax.random.normal(ks[2], (out_channels, in_channels), jnp.float32),
        "redu_bn": bn_params(ks[3], out_channels),
        "norm_bn": bn_params(ks[4], out_channels),
    }
    if is_fusion:
        p["fusion_w"] = 0.1 * jax.random.normal(ks[5], (out_channels, out_channels), jnp.float32)
        p["fusion_bn"] = bn_params(ks[6], out_channels)
    return p


def dcm_forward(x, params, *, fs, is_fusion, block_rows=512,
                matmul_dtype=jnp.float32, act_dtype=jnp.float32):
    """Pallas implementation of DynamicConvolutionalModule.forward.

    x: (B, Cin, H, W) NCHW; output (B, Cout, H, W) float32.
    v6e/v7x: matmul_dtype=act_dtype=bfloat16 recommended (f32 accumulation is
    kept inside the kernels).  v5e: act_dtype=bfloat16 still halves HBM bytes.
    """
    B, Cin, H, W = x.shape
    Cout = params["filter_gen_b"].shape[0]
    HP = jax.lax.Precision.HIGHEST

    # One NCHW->NHWC layout change for the whole module (and one back at end).
    # TODO(synk): fold these transposes into the first/last kernels' specs to
    # save two full HBM passes.
    x_cl = jnp.transpose(x, (0, 2, 3, 1))                          # (B, H, W, Cin)

    # 1) generated_filter = filter_gen_conv(adaptive_avg_pool2d(x, fs))
    #    tiny B*fs*fs-row matmul -> plain XLA (a pallas_call is launch overhead)
    pooled = adaptive_avg_pool_cl(x_cl, fs)                        # (B, fs, fs, Cin)
    gen = jnp.einsum("bijc,oc->bijo", pooled, params["filter_gen_w"],
                     precision=HP) + params["filter_gen_b"]
    filt = gen.reshape(B, fs * fs, Cout)                           # (B, taps, Cout)

    # 2) input_redu_conv: 1x1 conv (no bias) + folded BN + ReLU
    r_scale, r_bias = fold_bn(params["redu_bn"])
    xr = pointwise_conv(x_cl.reshape(B * H * W, Cin), params["redu_w"].T,
                        r_scale, r_bias, relu=True, block_rows=block_rows,
                        matmul_dtype=matmul_dtype, out_dtype=act_dtype)
    xr_cl = xr.reshape(B, H, W, Cout)

    # 3) dynamic grouped (depthwise) conv with generated filters + norm + ReLU
    n_scale, n_bias = fold_bn(params["norm_bn"])
    dw_out_dtype = act_dtype if is_fusion else jnp.float32
    out_cl = dynamic_depthwise_cl(xr_cl, filt, n_scale, n_bias, fs=fs,
                                  out_dtype=dw_out_dtype)

    # 4) optional fusion_conv: 1x1 conv (no bias) + folded BN + ReLU
    if is_fusion:
        f_scale, f_bias = fold_bn(params["fusion_bn"])
        o2 = pointwise_conv(out_cl.reshape(B * H * W, Cout), params["fusion_w"].T,
                            f_scale, f_bias, relu=True, block_rows=block_rows,
                            matmul_dtype=matmul_dtype, out_dtype=jnp.float32)
        out_cl = o2.reshape(B, H, W, Cout)

    return jnp.transpose(out_cl, (0, 3, 1, 2))                     # back to NCHW


# --------------------------------------------------------------------------
# Pure-JAX reference (mirrors the PyTorch forward) for correctness checks
# --------------------------------------------------------------------------
def reference_forward(x, params, *, fs, is_fusion):
    HP = jax.lax.Precision.HIGHEST
    B, Cin, H, W = x.shape
    Cout = params["filter_gen_b"].shape[0]

    pooled = jnp.transpose(
        adaptive_avg_pool_cl(jnp.transpose(x, (0, 2, 3, 1)), fs), (0, 3, 1, 2))
    gen = jnp.einsum("bcij,oc->boij", pooled, params["filter_gen_w"], precision=HP)
    gen = gen + params["filter_gen_b"][None, :, None, None]

    r_scale, r_bias = fold_bn(params["redu_bn"])
    xr = jnp.einsum("bchw,oc->bohw", x, params["redu_w"], precision=HP)
    xr = jnp.maximum(xr * r_scale[None, :, None, None] + r_bias[None, :, None, None], 0.0)

    pad = (fs - 1) // 2
    if (fs - 1) % 2 == 0:
        pads = ((pad, pad), (pad, pad))
    else:
        pads = ((pad + 1, pad), (pad + 1, pad))
    xg = xr.reshape(1, B * Cout, H, W)
    wt = gen.reshape(B * Cout, 1, fs, fs)
    out = jax.lax.conv_general_dilated(
        xg, wt, window_strides=(1, 1), padding=pads,
        dimension_numbers=("NCHW", "OIHW", "NCHW"),
        feature_group_count=B * Cout, precision=HP)
    out = out.reshape(B, Cout, H, W)

    n_scale, n_bias = fold_bn(params["norm_bn"])
    out = jnp.maximum(out * n_scale[None, :, None, None] + n_bias[None, :, None, None], 0.0)

    if is_fusion:
        f_scale, f_bias = fold_bn(params["fusion_bn"])
        out = jnp.einsum("bchw,oc->bohw", out, params["fusion_w"], precision=HP)
        out = jnp.maximum(out * f_scale[None, :, None, None] + f_bias[None, :, None, None], 0.0)
    return out


# --------------------------------------------------------------------------
if __name__ == "__main__":
    def run_case(key, *, B, Cin, Cout, H, W, fs, is_fusion, block_rows,
                 matmul_dtype=jnp.float32, act_dtype=jnp.float32, check=True):
        kx, kp = jax.random.split(key)
        x = jax.random.normal(kx, (B, Cin, H, W), jnp.float32)
        params = init_params(kp, Cin, Cout, is_fusion)
        out = dcm_forward(x, params, fs=fs, is_fusion=is_fusion,
                          block_rows=block_rows, matmul_dtype=matmul_dtype,
                          act_dtype=act_dtype)
        out = jax.block_until_ready(out)
        assert out.shape == (B, Cout, H, W) and out.dtype == jnp.float32
        if check:
            ref = reference_forward(x, params, fs=fs, is_fusion=is_fusion)
            np.testing.assert_allclose(np.asarray(out), np.asarray(ref),
                                       rtol=5e-3, atol=5e-3)
        else:
            assert bool(jnp.all(jnp.isfinite(out)))

    root = jax.random.PRNGKey(0)
    k_a, k_b, k_c = jax.random.split(root, 3)
    # small canonical case (with fusion conv), f32 path, checked vs reference
    run_case(k_a, B=2, Cin=8, Cout=4, H=16, W=16, fs=3, is_fusion=True,
             block_rows=1024)
    # multi-tile pointwise grid with a ragged last block, no fusion conv
    run_case(k_b, B=2, Cin=16, Cout=8, H=24, W=20, fs=3, is_fusion=False,
             block_rows=256)
    # bf16 inter-stage / bf16-MXU configuration (v6e/v7x recipe), smoke test
    run_case(k_c, B=2, Cin=8, Cout=4, H=16, W=16, fs=3, is_fusion=True,
             block_rows=256, matmul_dtype=jnp.bfloat16, act_dtype=jnp.bfloat16,
             check=False)

    print("KERNEL_OK")
</pallas_src>

<mosaic_0001>
module attributes {stable_mosaic.version = 11 : i64} {
  func.func @_pointwise_kernel(%arg0: i32, %arg1: memref<512x8xf32, #tpu.memory_space<vmem>>, %arg2: memref<8x4xf32, #tpu.memory_space<vmem>>, %arg3: memref<1x4xf32, #tpu.memory_space<vmem>>, %arg4: memref<1x4xf32, #tpu.memory_space<vmem>>, %arg5: memref<512x4xf32, #tpu.memory_space<vmem>>) attributes {dimension_semantics = [#tpu.dimension_semantics<parallel>], iteration_bounds = array<i64: 1>, scalar_prefetch = 0 : i64, scratch_operands = 0 : i64, tpu.core_type = #tpu.core_type<tc>, window_params = [{transform_indices = @transform_0, window_bounds = array<i64: 512, 8>}, {pipeline_mode = #tpu.pipeline_mode<synchronous>, transform_indices = @transform_1, window_bounds = array<i64: 8, 4>}, {pipeline_mode = #tpu.pipeline_mode<synchronous>, transform_indices = @transform_2, window_bounds = array<i64: 1, 4>}, {pipeline_mode = #tpu.pipeline_mode<synchronous>, transform_indices = @transform_3, window_bounds = array<i64: 1, 4>}, {transform_indices = @transform_4, window_bounds = array<i64: 512, 4>}]} {
    %c0 = arith.constant 0 : index
    %c0_0 = arith.constant 0 : index
    %0 = vector.load %arg1[%c0, %c0_0] : memref<512x8xf32, #tpu.memory_space<vmem>>, vector<512x8xf32>
    %c0_1 = arith.constant 0 : index
    %c0_2 = arith.constant 0 : index
    %1 = vector.load %arg2[%c0_1, %c0_2] : memref<8x4xf32, #tpu.memory_space<vmem>>, vector<8x4xf32>
    %cst = arith.constant dense<0.000000e+00> : vector<512x4xf32>
    %2 = tpu.matmul %0, %1, %cst {dimension_numbers = #tpu.dot_dimension_numbers<[1], [0], [0], [1], [0, 0, 1, 1], [], []>} : vector<512x8xf32>, vector<8x4xf32>, vector<512x4xf32> -> vector<512x4xf32>
    %c0_3 = arith.constant 0 : index
    %c0_4 = arith.constant 0 : index
    %3 = vector.load %arg3[%c0_3, %c0_4] : memref<1x4xf32, #tpu.memory_space<vmem>>, vector<1x4xf32>
    %4 = vector.broadcast %3 : vector<1x4xf32> to vector<512x4xf32>
    %5 = arith.mulf %2, %4 : vector<512x4xf32>
    %c0_5 = arith.constant 0 : index
    %c0_6 = arith.constant 0 : index
    %6 = vector.load %arg4[%c0_5, %c0_6] : memref<1x4xf32, #tpu.memory_space<vmem>>, vector<1x4xf32>
    %7 = vector.broadcast %6 : vector<1x4xf32> to vector<512x4xf32>
    %8 = arith.addf %5, %7 : vector<512x4xf32>
    %cst_7 = arith.constant 0.000000e+00 : f32
    %9 = vector.broadcast %cst_7 : f32 to vector<512x4xf32>
    %10 = arith.maximumf %8, %9 : vector<512x4xf32>
    %c0_8 = arith.constant 0 : index
    %c0_9 = arith.constant 0 : index
    %11 = vector.load %arg5[%c0_8, %c0_9] : memref<512x4xf32, #tpu.memory_space<vmem>>, vector<512x4xf32>
    tpu.vector_store %arg5[%c0_8, %c0_9], %10 {strides = array<i32>} : memref<512x4xf32, #tpu.memory_space<vmem>>, vector<512x4xf32>,
    return
  }
  func.func @transform_0(%arg0: i32) -> (i32, i32) {
    %c0_i32 = arith.constant 0 : i32
    %c0_i32_0 = arith.constant 0 : i32
    return %arg0, %c0_i32 : i32, i32
  }
  func.func @transform_1(%arg0: i32) -> (i32, i32) {
    %c0_i32 = arith.constant 0 : i32
    %c0_i32_0 = arith.constant 0 : i32
    %c0_i32_1 = arith.constant 0 : i32
    return %c0_i32, %c0_i32_0 : i32, i32
  }
  func.func @transform_2(%arg0: i32) -> (i32, i32) {
    %c0_i32 = arith.constant 0 : i32
    %c0_i32_0 = arith.constant 0 : i32
    %c0_i32_1 = arith.constant 0 : i32
    return %c0_i32, %c0_i32_0 : i32, i32
  }
  func.func @transform_3(%arg0: i32) -> (i32, i32) {
    %c0_i32 = arith.constant 0 : i32
    %c0_i32_0 = arith.constant 0 : i32
    %c0_i32_1 = arith.constant 0 : i32
    return %c0_i32, %c0_i32_0 : i32, i32
  }
  func.func @transform_4(%arg0: i32) -> (i32, i32) {
    %c0_i32 = arith.constant 0 : i32
    %c0_i32_0 = arith.constant 0 : i32
    return %arg0, %c0_i32 : i32, i32
  }
}

</mosaic_0001>

<llo_original>
// kernel: tpu_custom_call.1
$region0: #{tpu_custom_call.1}
  #allocation0 [shape = 'u32[]', space=smem, size = 0x4, offset = 0x4, fixed_abs, tag = 'smem constant byte address 0x4 - core index']
  #allocation1 [shape = 'u32[72,128]{1,0:T(1,128)}', space=vmem, size = 0x9000, scoped, tag = 'internal scratch']
  %s0 = inlined_call_operand.vmem [shape: f32[512,8], index: 0, kind: input, shape index: {}]
  %s1 = inlined_call_operand.vmem [shape: f32[8,4], index: 1, kind: input, shape index: {}]
  %s2 = inlined_call_operand.vmem [shape: f32[1,4], index: 2, kind: input, shape index: {}]
  %s3 = inlined_call_operand.vmem [shape: f32[1,4], index: 3, kind: input, shape index: {}]
  %s4 = inlined_call_operand.vmem [shape: f32[512,4], index: 4, kind: output, shape index: {}]
  %s5 = sld [smem:[#allocation0]]
  $region26: #{tpu_custom_call.1} parent=0
    _
  %s7 = ssub.s32 1, %s5
  %s8 = scalar_select 0, %s7, %s5
  // Predicated region
  $region2: #{tpu_custom_call.1} parent=0 // pred_check
    _
  $region3: #{tpu_custom_call.1} parent=0 // pred_check_branch
    %10 = sbr.rel (0) target = $region5
  $region4: #{tpu_custom_call.1} parent=0 // pred_region
    _
  $region5: #{tpu_custom_call.1} parent=0 // pred_fallthru
    _
  // Predicated region
  $region6: #{tpu_custom_call.1} parent=0 // pred_check
    _
  $region7: #{tpu_custom_call.1} parent=0 // pred_check_branch
    %12 = sbr.rel (0) target = $region9
  $region8: #{tpu_custom_call.1} parent=0 // pred_region
    _
  $region9: #{tpu_custom_call.1} parent=0 // pred_fallthru
    _
  // Predicated region
  $region10: #{tpu_custom_call.1} parent=0 // pred_check
    _
  $region11: #{tpu_custom_call.1} parent=0 // pred_check_branch
    %14 = sbr.rel (0) target = $region13
  $region12: #{tpu_custom_call.1} parent=0 // pred_region
    _
  $region13: #{tpu_custom_call.1} parent=0 // pred_fallthru
    _
  // Predicated region
  $region14: #{tpu_custom_call.1} parent=0 // pred_check
    _
  $region15: #{tpu_custom_call.1} parent=0 // pred_check_branch
    %16 = sbr.rel (0) target = $region17
  $region16: #{tpu_custom_call.1} parent=0 // pred_region
    _
  $region17: #{tpu_custom_call.1} parent=0 // pred_fallthru
    _
  %v17 = vld [vmem:[%s0] sm:$0xff]
  %v18 = vld [vmem:[%s0 + $0x8] sm:$0xff]
  %v19 = vld [vmem:[%s0 + $0x10] sm:$0xff]
  %v20 = vld [vmem:[%s0 + $0x18] sm:$0xff]
  %v21 = vld [vmem:[%s0 + $0x20] sm:$0xff]
  %v22 = vld [vmem:[%s0 + $0x28] sm:$0xff]
  %v23 = vld [vmem:[%s0 + $0x30] sm:$0xff]
  %v24 = vld [vmem:[%s0 + $0x38] sm:$0xff]
  %v25 = vld [vmem:[%s0 + $0x40] sm:$0xff]
  %v26 = vld [vmem:[%s0 + $0x48] sm:$0xff]
  %v27 = vld [vmem:[%s0 + $0x50] sm:$0xff]
  %v28 = vld [vmem:[%s0 + $0x58] sm:$0xff]
  %v29 = vld [vmem:[%s0 + $0x60] sm:$0xff]
  %v30 = vld [vmem:[%s0 + $0x68] sm:$0xff]
  %v31 = vld [vmem:[%s0 + $0x70] sm:$0xff]
  %v32 = vld [vmem:[%s0 + $0x78] sm:$0xff]
  %v33 = vld [vmem:[%s0 + $0x80] sm:$0xff]
  %v34 = vld [vmem:[%s0 + $0x88] sm:$0xff]
  %v35 = vld [vmem:[%s0 + $0x90] sm:$0xff]
  %v36 = vld [vmem:[%s0 + $0x98] sm:$0xff]
  %v37 = vld [vmem:[%s0 + $0xa0] sm:$0xff]
  %v38 = vld [vmem:[%s0 + $0xa8] sm:$0xff]
  %v39 = vld [vmem:[%s0 + $0xb0] sm:$0xff]
  %v40 = vld [vmem:[%s0 + $0xb8] sm:$0xff]
  %v41 = vld [vmem:[%s0 + $0xc0] sm:$0xff]
  %v42 = vld [vmem:[%s0 + $0xc8] sm:$0xff]
  %v43 = vld [vmem:[%s0 + $0xd0] sm:$0xff]
  %v44 = vld [vmem:[%s0 + $0xd8] sm:$0xff]
  %v45 = vld [vmem:[%s0 + $0xe0] sm:$0xff]
  %v46 = vld [vmem:[%s0 + $0xe8] sm:$0xff]
  %v47 = vld [vmem:[%s0 + $0xf0] sm:$0xff]
  %v48 = vld [vmem:[%s0 + $0xf8] sm:$0xff]
  %v49 = vld [vmem:[%s0 + $0x100] sm:$0xff]
  %v50 = vld [vmem:[%s0 + $0x108] sm:$0xff]
  %v51 = vld [vmem:[%s0 + $0x110] sm:$0xff]
  %v52 = vld [vmem:[%s0 + $0x118] sm:$0xff]
  %v53 = vld [vmem:[%s0 + $0x120] sm:$0xff]
  %v54 = vld [vmem:[%s0 + $0x128] sm:$0xff]
  %v55 = vld [vmem:[%s0 + $0x130] sm:$0xff]
  %v56 = vld [vmem:[%s0 + $0x138] sm:$0xff]
  %v57 = vld [vmem:[%s0 + $0x140] sm:$0xff]
  %v58 = vld [vmem:[%s0 + $0x148] sm:$0xff]
  %v59 = vld [vmem:[%s0 + $0x150] sm:$0xff]
  %v60 = vld [vmem:[%s0 + $0x158] sm:$0xff]
  %v61 = vld [vmem:[%s0 + $0x160] sm:$0xff]
  %v62 = vld [vmem:[%s0 + $0x168] sm:$0xff]
  %v63 = vld [vmem:[%s0 + $0x170] sm:$0xff]
  %v64 = vld [vmem:[%s0 + $0x178] sm:$0xff]
  %v65 = vld [vmem:[%s0 + $0x180] sm:$0xff]
  %v66 = vld [vmem:[%s0 + $0x188] sm:$0xff]
  %v67 = vld [vmem:[%s0 + $0x190] sm:$0xff]
  %v68 = vld [vmem:[%s0 + $0x198] sm:$0xff]
  %v69 = vld [vmem:[%s0 + $0x1a0] sm:$0xff]
  %v70 = vld [vmem:[%s0 + $0x1a8] sm:$0xff]
  %v71 = vld [vmem:[%s0 + $0x1b0] sm:$0xff]
  %v72 = vld [vmem:[%s0 + $0x1b8] sm:$0xff]
  %v73 = vld [vmem:[%s0 + $0x1c0] sm:$0xff]
  %v74 = vld [vmem:[%s0 + $0x1c8] sm:$0xff]
  %v75 = vld [vmem:[%s0 + $0x1d0] sm:$0xff]
  %v76 = vld [vmem:[%s0 + $0x1d8] sm:$0xff]
  %v77 = vld [vmem:[%s0 + $0x1e0] sm:$0xff]
  %v78 = vld [vmem:[%s0 + $0x1e8] sm:$0xff]
  %v79 = vld [vmem:[%s0 + $0x1f0] sm:$0xff]
  %v80 = vld [vmem:[%s0 + $0x1f8] sm:$0xff]
  %v81 = vld [vmem:[%s1] sm:$0xff]
  %vm82 = vcmask 64512
  %v84 = vsel %vm82, %v17, 0
  %v87 = vsel %vm82, %v18, 0
  %v90 = vsel %vm82, %v19, 0
  %v93 = vsel %vm82, %v20, 0
  %v96 = vsel %vm82, %v21, 0
  %v99 = vsel %vm82, %v22, 0
  %v102 = vsel %vm82, %v23, 0
  %v105 = vsel %vm82, %v24, 0
  %v108 = vsel %vm82, %v25, 0
  %v111 = vsel %vm82, %v26, 0
  %v114 = vsel %vm82, %v27, 0
  %v117 = vsel %vm82, %v28, 0
  %v120 = vsel %vm82, %v29, 0
  %v123 = vsel %vm82, %v30, 0
  %v126 = vsel %vm82, %v31, 0
  %v129 = vsel %vm82, %v32, 0
  %v132 = vsel %vm82, %v33, 0
  %v135 = vsel %vm82, %v34, 0
  %v138 = vsel %vm82, %v35, 0
  %v141 = vsel %vm82, %v36, 0
  %v144 = vsel %vm82, %v37, 0
  %v147 = vsel %vm82, %v38, 0
  %v150 = vsel %vm82, %v39, 0
  %v153 = vsel %vm82, %v40, 0
  %v156 = vsel %vm82, %v41, 0
  %v159 = vsel %vm82, %v42, 0
  %v162 = vsel %vm82, %v43, 0
  %v165 = vsel %vm82, %v44, 0
  %v168 = vsel %vm82, %v45, 0
  %v171 = vsel %vm82, %v46, 0
  %v174 = vsel %vm82, %v47, 0
  %v177 = vsel %vm82, %v48, 0
  %v180 = vsel %vm82, %v49, 0
  %v183 = vsel %vm82, %v50, 0
  %v186 = vsel %vm82, %v51, 0
  %v189 = vsel %vm82, %v52, 0
  %v192 = vsel %vm82, %v53, 0
  %v195 = vsel %vm82, %v54, 0
  %v198 = vsel %vm82, %v55, 0
  %v201 = vsel %vm82, %v56, 0
  %v204 = vsel %vm82, %v57, 0
  %v207 = vsel %vm82, %v58, 0
  %v210 = vsel %vm82, %v59, 0
  %v213 = vsel %vm82, %v60, 0
  %v216 = vsel %vm82, %v61, 0
  %v219 = vsel %vm82, %v62, 0
  %v222 = vsel %vm82, %v63, 0
  %v225 = vsel %vm82, %v64, 0
  %v228 = vsel %vm82, %v65, 0
  %v231 = vsel %vm82, %v66, 0
  %v234 = vsel %vm82, %v67, 0
  %v237 = vsel %vm82, %v68, 0
  %v240 = vsel %vm82, %v69, 0
  %v243 = vsel %vm82, %v70, 0
  %v246 = vsel %vm82, %v71, 0
  %v249 = vsel %vm82, %v72, 0
  %v252 = vsel %vm82, %v73, 0
  %v255 = vsel %vm82, %v74, 0
  %v258 = vsel %vm82, %v75, 0
  %v261 = vsel %vm82, %v76, 0
  %v264 = vsel %vm82, %v77, 0
  %v267 = vsel %vm82, %v78, 0
  %v270 = vsel %vm82, %v79, 0
  %v273 = vsel %vm82, %v80, 0
  %275 = vmatpush.msra.mxu0 0.0
  %276 = vmatpush.msra.mxu0 0.0
  %277 = vmatpush.msra.mxu0 0.0
  %278 = vmatpush.msra.mxu0 0.0
  %279 = vmatpush.msra.mxu0 0.0
  %280 = vmatpush.msra.mxu0 0.0
  %281 = vmatpush.msra.mxu0 0.0
  %282 = vmatpush.msra.mxu0 0.0
  %283 = vmatpush.msra.mxu0 0.0
  %284 = vmatpush.msra.mxu0 0.0
  %285 = vmatpush.msra.mxu0 0.0
  %286 = vmatpush.msra.mxu0 0.0
  %287 = vmatpush.msra.mxu0 0.0
  %288 = vmatpush.msra.mxu0 0.0
  %289 = vmatpush.msra.mxu0 0.0
  %290 = vmatpush.msra.mxu0 %v81
  %291 = vmatmul.f32.gmra.mxu0 %v84
  %v292 = vpop.f32.mrf.mxu0
  %v293 = vadd.f32 0.0, %v292
  %294 = vmatmul.f32.gmra.mxu0 %v87
  %v295 = vpop.f32.mrf.mxu0
  %v296 = vadd.f32 0.0, %v295
  %297 = vmatmul.f32.gmra.mxu0 %v90
  %v298 = vpop.f32.mrf.mxu0
  %v299 = vadd.f32 0.0, %v298
  %300 = vmatmul.f32.gmra.mxu0 %v93
  %v301 = vpop.f32.mrf.mxu0
  %v302 = vadd.f32 0.0, %v301
  %303 = vmatmul.f32.gmra.mxu0 %v96
  %v304 = vpop.f32.mrf.mxu0
  %v305 = vadd.f32 0.0, %v304
  %306 = vmatmul.f32.gmra.mxu0 %v99
  %v307 = vpop.f32.mrf.mxu0
  %v308 = vadd.f32 0.0, %v307
  %309 = vmatmul.f32.gmra.mxu0 %v102
  %v310 = vpop.f32.mrf.mxu0
  %v311 = vadd.f32 0.0, %v310
  %312 = vmatmul.f32.gmra.mxu0 %v105
  %v313 = vpop.f32.mrf.mxu0
  %v314 = vadd.f32 0.0, %v313
  %315 = vmatmul.f32.gmra.mxu0 %v108
  %v316 = vpop.f32.mrf.mxu0
  %v317 = vadd.f32 0.0, %v316
  %318 = vmatmul.f32.gmra.mxu0 %v111
  %v319 = vpop.f32.mrf.mxu0
  %v320 = vadd.f32 0.0, %v319
  %321 = vmatmul.f32.gmra.mxu0 %v114
  %v322 = vpop.f32.mrf.mxu0
  %v323 = vadd.f32 0.0, %v322
  %324 = vmatmul.f32.gmra.mxu0 %v117
  %v325 = vpop.f32.mrf.mxu0
  %v326 = vadd.f32 0.0, %v325
  %327 = vmatmul.f32.gmra.mxu0 %v120
  %v328 = vpop.f32.mrf.mxu0
  %v329 = vadd.f32 0.0, %v328
  %330 = vmatmul.f32.gmra.mxu0 %v123
  %v331 = vpop.f32.mrf.mxu0
  %v332 = vadd.f32 0.0, %v331
  %333 = vmatmul.f32.gmra.mxu0 %v126
  %v334 = vpop.f32.mrf.mxu0
  %v335 = vadd.f32 0.0, %v334
  %336 = vmatmul.f32.gmra.mxu0 %v129
  %v337 = vpop.f32.mrf.mxu0
  %v338 = vadd.f32 0.0, %v337
  %339 = vmatmul.f32.gmra.mxu0 %v132
  %v340 = vpop.f32.mrf.mxu0
  %v341 = vadd.f32 0.0, %v340
  %342 = vmatmul.f32.gmra.mxu0 %v135
  %v343 = vpop.f32.mrf.mxu0
  %v344 = vadd.f32 0.0, %v343
  %345 = vmatmul.f32.gmra.mxu0 %v138
  %v346 = vpop.f32.mrf.mxu0
  %v347 = vadd.f32 0.0, %v346
  %348 = vmatmul.f32.gmra.mxu0 %v141
  %v349 = vpop.f32.mrf.mxu0
  %v350 = vadd.f32 0.0, %v349
  %351 = vmatmul.f32.gmra.mxu0 %v144
  %v352 = vpop.f32.mrf.mxu0
  %v353 = vadd.f32 0.0, %v352
  %354 = vmatmul.f32.gmra.mxu0 %v147
  %v355 = vpop.f32.mrf.mxu0
  %v356 = vadd.f32 0.0, %v355
  %357 = vmatmul.f32.gmra.mxu0 %v150
  %v358 = vpop.f32.mrf.mxu0
  %v359 = vadd.f32 0.0, %v358
  %360 = vmatmul.f32.gmra.mxu0 %v153
  %v361 = vpop.f32.mrf.mxu0
  %v362 = vadd.f32 0.0, %v361
  %363 = vmatmul.f32.gmra.mxu0 %v156
  %v364 = vpop.f32.mrf.mxu0
  %v365 = vadd.f32 0.0, %v364
  %366 = vmatmul.f32.gmra.mxu0 %v159
  %v367 = vpop.f32.mrf.mxu0
  %v368 = vadd.f32 0.0, %v367
  %369 = vmatmul.f32.gmra.mxu0 %v162
  %v370 = vpop.f32.mrf.mxu0
  %v371 = vadd.f32 0.0, %v370
  %372 = vmatmul.f32.gmra.mxu0 %v165
  %v373 = vpop.f32.mrf.mxu0
  %v374 = vadd.f32 0.0, %v373
  %375 = vmatmul.f32.gmra.mxu0 %v168
  %v376 = vpop.f32.mrf.mxu0
  %v377 = vadd.f32 0.0, %v376
  %378 = vmatmul.f32.gmra.mxu0 %v171
  %v379 = vpop.f32.mrf.mxu0
  %v380 = vadd.f32 0.0, %v379
  %381 = vmatmul.f32.gmra.mxu0 %v174
  %v382 = vpop.f32.mrf.mxu0
  %v383 = vadd.f32 0.0, %v382
  %384 = vmatmul.f32.gmra.mxu0 %v177
  %v385 = vpop.f32.mrf.mxu0
  %v386 = vadd.f32 0.0, %v385
  %387 = vmatmul.f32.gmra.mxu0 %v180
  %v388 = vpop.f32.mrf.mxu0
  %v389 = vadd.f32 0.0, %v388
  %390 = vmatmul.f32.gmra.mxu0 %v183
  %v391 = vpop.f32.mrf.mxu0
  %v392 = vadd.f32 0.0, %v391
  %393 = vmatmul.f32.gmra.mxu0 %v186
  %v394 = vpop.f32.mrf.mxu0
  %v395 = vadd.f32 0.0, %v394
  %396 = vmatmul.f32.gmra.mxu0 %v189
  %v397 = vpop.f32.mrf.mxu0
  %v398 = vadd.f32 0.0, %v397
  %399 = vmatmul.f32.gmra.mxu0 %v192
  %v400 = vpop.f32.mrf.mxu0
  %v401 = vadd.f32 0.0, %v400
  %402 = vmatmul.f32.gmra.mxu0 %v195
  %v403 = vpop.f32.mrf.mxu0
  %v404 = vadd.f32 0.0, %v403
  %405 = vmatmul.f32.gmra.mxu0 %v198
  %v406 = vpop.f32.mrf.mxu0
  %v407 = vadd.f32 0.0, %v406
  %408 = vmatmul.f32.gmra.mxu0 %v201
  %v409 = vpop.f32.mrf.mxu0
  %v410 = vadd.f32 0.0, %v409
  %411 = vmatmul.f32.gmra.mxu0 %v204
  %v412 = vpop.f32.mrf.mxu0
  %v413 = vadd.f32 0.0, %v412
  %414 = vmatmul.f32.gmra.mxu0 %v207
  %v415 = vpop.f32.mrf.mxu0
  %v416 = vadd.f32 0.0, %v415
  %417 = vmatmul.f32.gmra.mxu0 %v210
  %v418 = vpop.f32.mrf.mxu0
  %v419 = vadd.f32 0.0, %v418
  %420 = vmatmul.f32.gmra.mxu0 %v213
  %v421 = vpop.f32.mrf.mxu0
  %v422 = vadd.f32 0.0, %v421
  %423 = vmatmul.f32.gmra.mxu0 %v216
  %v424 = vpop.f32.mrf.mxu0
  %v425 = vadd.f32 0.0, %v424
  %426 = vmatmul.f32.gmra.mxu0 %v219
  %v427 = vpop.f32.mrf.mxu0
  %v428 = vadd.f32 0.0, %v427
  %429 = vmatmul.f32.gmra.mxu0 %v222
  %v430 = vpop.f32.mrf.mxu0
  %v431 = vadd.f32 0.0, %v430
  %432 = vmatmul.f32.gmra.mxu0 %v225
  %v433 = vpop.f32.mrf.mxu0
  %v434 = vadd.f32 0.0, %v433
  %435 = vmatmul.f32.gmra.mxu0 %v228
  %v436 = vpop.f32.mrf.mxu0
  %v437 = vadd.f32 0.0, %v436
  %438 = vmatmul.f32.gmra.mxu0 %v231
  %v439 = vpop.f32.mrf.mxu0
  %v440 = vadd.f32 0.0, %v439
  %441 = vmatmul.f32.gmra.mxu0 %v234
  %v442 = vpop.f32.mrf.mxu0
  %v443 = vadd.f32 0.0, %v442
  %444 = vmatmul.f32.gmra.mxu0 %v237
  %v445 = vpop.f32.mrf.mxu0
  %v446 = vadd.f32 0.0, %v445
  %447 = vmatmul.f32.gmra.mxu0 %v240
  %v448 = vpop.f32.mrf.mxu0
  %v449 = vadd.f32 0.0, %v448
  %450 = vmatmul.f32.gmra.mxu0 %v243
  %v451 = vpop.f32.mrf.mxu0
  %v452 = vadd.f32 0.0, %v451
  %453 = vmatmul.f32.gmra.mxu0 %v246
  %v454 = vpop.f32.mrf.mxu0
  %v455 = vadd.f32 0.0, %v454
  %456 = vmatmul.f32.gmra.mxu0 %v249
  %v457 = vpop.f32.mrf.mxu0
  %v458 = vadd.f32 0.0, %v457
  %459 = vmatmul.f32.gmra.mxu0 %v252
  %v460 = vpop.f32.mrf.mxu0
  %v461 = vadd.f32 0.0, %v460
  %462 = vmatmul.f32.gmra.mxu0 %v255
  %v463 = vpop.f32.mrf.mxu0
  %v464 = vadd.f32 0.0, %v463
  %465 = vmatmul.f32.gmra.mxu0 %v258
  %v466 = vpop.f32.mrf.mxu0
  %v467 = vadd.f32 0.0, %v466
  %468 = vmatmul.f32.gmra.mxu0 %v261
  %v469 = vpop.f32.mrf.mxu0
  %v470 = vadd.f32 0.0, %v469
  %471 = vmatmul.f32.gmra.mxu0 %v264
  %v472 = vpop.f32.mrf.mxu0
  %v473 = vadd.f32 0.0, %v472
  %474 = vmatmul.f32.gmra.mxu0 %v267
  %v475 = vpop.f32.mrf.mxu0
  %v476 = vadd.f32 0.0, %v475
  %477 = vmatmul.f32.gmra.mxu0 %v270
  %v478 = vpop.f32.mrf.mxu0
  %v479 = vadd.f32 0.0, %v478
  %480 = vmatmul.f32.gmra.mxu0 %v273
  %v481 = vpop.f32.mrf.mxu0
  %v482 = vadd.f32 0.0, %v481
  %483 = vdwg.mxu0
  %v484 = vld [vmem:[%s2] sm:$0x1]
  %v486 = vperm.slane %v484, 0
  %v488 = vmul.f32 %v293, %v486
  %v489 = vmul.f32 %v296, %v486
  %v490 = vmul.f32 %v299, %v486
  %v491 = vmul.f32 %v302, %v486
  %v492 = vmul.f32 %v305, %v486
  %v493 = vmul.f32 %v308, %v486
  %v494 = vmul.f32 %v311, %v486
  %v495 = vmul.f32 %v314, %v486
  %v496 = vmul.f32 %v317, %v486
  %v497 = vmul.f32 %v320, %v486
  %v498 = vmul.f32 %v323, %v486
  %v499 = vmul.f32 %v326, %v486
  %v500 = vmul.f32 %v329, %v486
  %v501 = vmul.f32 %v332, %v486
  %v502 = vmul.f32 %v335, %v486
  %v503 = vmul.f32 %v338, %v486
  %v504 = vmul.f32 %v341, %v486
  %v505 = vmul.f32 %v344, %v486
  %v506 = vmul.f32 %v347, %v486
  %v507 = vmul.f32 %v350, %v486
  %v508 = vmul.f32 %v353, %v486
  %v509 = vmul.f32 %v356, %v486
  %v510 = vmul.f32 %v359, %v486
  %v511 = vmul.f32 %v362, %v486
  %v512 = vmul.f32 %v365, %v486
  %v513 = vmul.f32 %v368, %v486
  %v514 = vmul.f32 %v371, %v486
  %v515 = vmul.f32 %v374, %v486
  %v516 = vmul.f32 %v377, %v486
  %v517 = vmul.f32 %v380, %v486
  %v518 = vmul.f32 %v383, %v486
  %v519 = vmul.f32 %v386, %v486
  %v520 = vmul.f32 %v389, %v486
  %v521 = vmul.f32 %v392, %v486
  %v522 = vmul.f32 %v395, %v486
  %v523 = vmul.f32 %v398, %v486
  %v524 = vmul.f32 %v401, %v486
  %v525 = vmul.f32 %v404, %v486
  %v526 = vmul.f32 %v407, %v486
  %v527 = vmul.f32 %v410, %v486
  %v528 = vmul.f32 %v413, %v486
  %v529 = vmul.f32 %v416, %v486
  %v530 = vmul.f32 %v419, %v486
  %v531 = vmul.f32 %v422, %v486
  %v532 = vmul.f32 %v425, %v486
  %v533 = vmul.f32 %v428, %v486
  %v534 = vmul.f32 %v431, %v486
  %v535 = vmul.f32 %v434, %v486
  %v536 = vmul.f32 %v437, %v486
  %v537 = vmul.f32 %v440, %v486
  %v538 = vmul.f32 %v443, %v486
  %v539 = vmul.f32 %v446, %v486
  %v540 = vmul.f32 %v449, %v486
  %v541 = vmul.f32 %v452, %v486
  %v542 = vmul.f32 %v455, %v486
  %v543 = vmul.f32 %v458, %v486
  %v544 = vmul.f32 %v461, %v486
  %v545 = vmul.f32 %v464, %v486
  %v546 = vmul.f32 %v467, %v486
  %v547 = vmul.f32 %v470, %v486
  %v548 = vmul.f32 %v473, %v486
  %v549 = vmul.f32 %v476, %v486
  %v550 = vmul.f32 %v479, %v486
  %v551 = vmul.f32 %v482, %v486
  %v552 = vld [vmem:[%s3] sm:$0x1]
  %v554 = vperm.slane %v552, 0
  %v556 = vadd.f32 %v488, %v554
  %v557 = vadd.f32 %v489, %v554
  %v558 = vadd.f32 %v490, %v554
  %v559 = vadd.f32 %v491, %v554
  %v560 = vadd.f32 %v492, %v554
  %v561 = vadd.f32 %v493, %v554
  %v562 = vadd.f32 %v494, %v554
  %v563 = vadd.f32 %v495, %v554
  %v564 = vadd.f32 %v496, %v554
  %v565 = vadd.f32 %v497, %v554
  %v566 = vadd.f32 %v498, %v554
  %v567 = vadd.f32 %v499, %v554
  %v568 = vadd.f32 %v500, %v554
  %v569 = vadd.f32 %v501, %v554
  %v570 = vadd.f32 %v502, %v554
  %v571 = vadd.f32 %v503, %v554
  %v572 = vadd.f32 %v504, %v554
  %v573 = vadd.f32 %v505, %v554
  %v574 = vadd.f32 %v506, %v554
  %v575 = vadd.f32 %v507, %v554
  %v576 = vadd.f32 %v508, %v554
  %v577 = vadd.f32 %v509, %v554
  %v578 = vadd.f32 %v510, %v554
  %v579 = vadd.f32 %v511, %v554
  %v580 = vadd.f32 %v512, %v554
  %v581 = vadd.f32 %v513, %v554
  %v582 = vadd.f32 %v514, %v554
  %v583 = vadd.f32 %v515, %v554
  %v584 = vadd.f32 %v516, %v554
  %v585 = vadd.f32 %v517, %v554
  %v586 = vadd.f32 %v518, %v554
  %v587 = vadd.f32 %v519, %v554
  %v588 = vadd.f32 %v520, %v554
  %v589 = vadd.f32 %v521, %v554
  %v590 = vadd.f32 %v522, %v554
  %v591 = vadd.f32 %v523, %v554
  %v592 = vadd.f32 %v524, %v554
  %v593 = vadd.f32 %v525, %v554
  %v594 = vadd.f32 %v526, %v554
  %v595 = vadd.f32 %v527, %v554
  %v596 = vadd.f32 %v528, %v554
  %v597 = vadd.f32 %v529, %v554
  %v598 = vadd.f32 %v530, %v554
  %v599 = vadd.f32 %v531, %v554
  %v600 = vadd.f32 %v532, %v554
  %v601 = vadd.f32 %v533, %v554
  %v602 = vadd.f32 %v534, %v554
  %v603 = vadd.f32 %v535, %v554
  %v604 = vadd.f32 %v536, %v554
  %v605 = vadd.f32 %v537, %v554
  %v606 = vadd.f32 %v538, %v554
  %v607 = vadd.f32 %v539, %v554
  %v608 = vadd.f32 %v540, %v554
  %v609 = vadd.f32 %v541, %v554
  %v610 = vadd.f32 %v542, %v554
  %v611 = vadd.f32 %v543, %v554
  %v612 = vadd.f32 %v544, %v554
  %v613 = vadd.f32 %v545, %v554
  %v614 = vadd.f32 %v546, %v554
  %v615 = vadd.f32 %v547, %v554
  %v616 = vadd.f32 %v548, %v554
  %v617 = vadd.f32 %v549, %v554
  %v618 = vadd.f32 %v550, %v554
  %v619 = vadd.f32 %v551, %v554
  %v620 = vmax.f32 %v556, 0.0
  %v621 = vmax.f32 %v557, 0.0
  %v622 = vmax.f32 %v558, 0.0
  %v623 = vmax.f32 %v559, 0.0
  %v624 = vmax.f32 %v560, 0.0
  %v625 = vmax.f32 %v561, 0.0
  %v626 = vmax.f32 %v562, 0.0
  %v627 = vmax.f32 %v563, 0.0
  %v628 = vmax.f32 %v564, 0.0
  %v629 = vmax.f32 %v565, 0.0
  %v630 = vmax.f32 %v566, 0.0
  %v631 = vmax.f32 %v567, 0.0
  %v632 = vmax.f32 %v568, 0.0
  %v633 = vmax.f32 %v569, 0.0
  %v634 = vmax.f32 %v570, 0.0
  %v635 = vmax.f32 %v571, 0.0
  %v636 = vmax.f32 %v572, 0.0
  %v637 = vmax.f32 %v573, 0.0
  %v638 = vmax.f32 %v574, 0.0
  %v639 = vmax.f32 %v575, 0.0
  %v640 = vmax.f32 %v576, 0.0
  %v641 = vmax.f32 %v577, 0.0
  %v642 = vmax.f32 %v578, 0.0
  %v643 = vmax.f32 %v579, 0.0
  %v644 = vmax.f32 %v580, 0.0
  %v645 = vmax.f32 %v581, 0.0
  %v646 = vmax.f32 %v582, 0.0
  %v647 = vmax.f32 %v583, 0.0
  %v648 = vmax.f32 %v584, 0.0
  %v649 = vmax.f32 %v585, 0.0
  %v650 = vmax.f32 %v586, 0.0
  %v651 = vmax.f32 %v587, 0.0
  %v652 = vmax.f32 %v588, 0.0
  %v653 = vmax.f32 %v589, 0.0
  %v654 = vmax.f32 %v590, 0.0
  %v655 = vmax.f32 %v591, 0.0
  %v656 = vmax.f32 %v592, 0.0
  %v657 = vmax.f32 %v593, 0.0
  %v658 = vmax.f32 %v594, 0.0
  %v659 = vmax.f32 %v595, 0.0
  %v660 = vmax.f32 %v596, 0.0
  %v661 = vmax.f32 %v597, 0.0
  %v662 = vmax.f32 %v598, 0.0
  %v663 = vmax.f32 %v599, 0.0
  %v664 = vmax.f32 %v600, 0.0
  %v665 = vmax.f32 %v601, 0.0
  %v666 = vmax.f32 %v602, 0.0
  %v667 = vmax.f32 %v603, 0.0
  %v668 = vmax.f32 %v604, 0.0
  %v669 = vmax.f32 %v605, 0.0
  %v670 = vmax.f32 %v606, 0.0
  %v671 = vmax.f32 %v607, 0.0
  %v672 = vmax.f32 %v608, 0.0
  %v673 = vmax.f32 %v609, 0.0
  %v674 = vmax.f32 %v610, 0.0
  %v675 = vmax.f32 %v611, 0.0
  %v676 = vmax.f32 %v612, 0.0
  %v677 = vmax.f32 %v613, 0.0
  %v678 = vmax.f32 %v614, 0.0
  %v679 = vmax.f32 %v615, 0.0
  %v680 = vmax.f32 %v616, 0.0
  %v681 = vmax.f32 %v617, 0.0
  %v682 = vmax.f32 %v618, 0.0
  %v683 = vmax.f32 %v619, 0.0
  %vm684 = vcmask 31744
  %685 = vst.msk [vmem:[%s4] sm:$0xff] %vm684, %v620
  %686 = vst.msk [vmem:[%s4 + $0x8] sm:$0xff] %vm684, %v621
  %687 = vst.msk [vmem:[%s4 + $0x10] sm:$0xff] %vm684, %v622
  %688 = vst.msk [vmem:[%s4 + $0x18] sm:$0xff] %vm684, %v623
  %689 = vst.msk [vmem:[%s4 + $0x20] sm:$0xff] %vm684, %v624
  %690 = vst.msk [vmem:[%s4 + $0x28] sm:$0xff] %vm684, %v625
  %691 = vst.msk [vmem:[%s4 + $0x30] sm:$0xff] %vm684, %v626
  %692 = vst.msk [vmem:[%s4 + $0x38] sm:$0xff] %vm684, %v627
  %693 = vst.msk [vmem:[%s4 + $0x40] sm:$0xff] %vm684, %v628
  %694 = vst.msk [vmem:[%s4 + $0x48] sm:$0xff] %vm684, %v629
  %695 = vst.msk [vmem:[%s4 + $0x50] sm:$0xff] %vm684, %v630
  %696 = vst.msk [vmem:[%s4 + $0x58] sm:$0xff] %vm684, %v631
  %697 = vst.msk [vmem:[%s4 + $0x60] sm:$0xff] %vm684, %v632
  %698 = vst.msk [vmem:[%s4 + $0x68] sm:$0xff] %vm684, %v633
  %699 = vst.msk [vmem:[%s4 + $0x70] sm:$0xff] %vm684, %v634
  %700 = vst.msk [vmem:[%s4 + $0x78] sm:$0xff] %vm684, %v635
  %701 = vst.msk [vmem:[%s4 + $0x80] sm:$0xff] %vm684, %v636
  %702 = vst.msk [vmem:[%s4 + $0x88] sm:$0xff] %vm684, %v637
  %703 = vst.msk [vmem:[%s4 + $0x90] sm:$0xff] %vm684, %v638
  %704 = vst.msk [vmem:[%s4 + $0x98] sm:$0xff] %vm684, %v639
  %705 = vst.msk [vmem:[%s4 + $0xa0] sm:$0xff] %vm684, %v640
  %706 = vst.msk [vmem:[%s4 + $0xa8] sm:$0xff] %vm684, %v641
  %707 = vst.msk [vmem:[%s4 + $0xb0] sm:$0xff] %vm684, %v642
  %708 = vst.msk [vmem:[%s4 + $0xb8] sm:$0xff] %vm684, %v643
  %709 = vst.msk [vmem:[%s4 + $0xc0] sm:$0xff] %vm684, %v644
  %710 = vst.msk [vmem:[%s4 + $0xc8] sm:$0xff] %vm684, %v645
  %711 = vst.msk [vmem:[%s4 + $0xd0] sm:$0xff] %vm684, %v646
  %712 = vst.msk [vmem:[%s4 + $0xd8] sm:$0xff] %vm684, %v647
  %713 = vst.msk [vmem:[%s4 + $0xe0] sm:$0xff] %vm684, %v648
  %714 = vst.msk [vmem:[%s4 + $0xe8] sm:$0xff] %vm684, %v649
  %715 = vst.msk [vmem:[%s4 + $0xf0] sm:$0xff] %vm684, %v650
  %716 = vst.msk [vmem:[%s4 + $0xf8] sm:$0xff] %vm684, %v651
  %717 = vst.msk [vmem:[%s4 + $0x100] sm:$0xff] %vm684, %v652
  %718 = vst.msk [vmem:[%s4 + $0x108] sm:$0xff] %vm684, %v653
  %719 = vst.msk [vmem:[%s4 + $0x110] sm:$0xff] %vm684, %v654
  %720 = vst.msk [vmem:[%s4 + $0x118] sm:$0xff] %vm684, %v655
  %721 = vst.msk [vmem:[%s4 + $0x120] sm:$0xff] %vm684, %v656
  %722 = vst.msk [vmem:[%s4 + $0x128] sm:$0xff] %vm684, %v657
  %723 = vst.msk [vmem:[%s4 + $0x130] sm:$0xff] %vm684, %v658
  %724 = vst.msk [vmem:[%s4 + $0x138] sm:$0xff] %vm684, %v659
  %725 = vst.msk [vmem:[%s4 + $0x140] sm:$0xff] %vm684, %v660
  %726 = vst.msk [vmem:[%s4 + $0x148] sm:$0xff] %vm684, %v661
  %727 = vst.msk [vmem:[%s4 + $0x150] sm:$0xff] %vm684, %v662
  %728 = vst.msk [vmem:[%s4 + $0x158] sm:$0xff] %vm684, %v663
  %729 = vst.msk [vmem:[%s4 + $0x160] sm:$0xff] %vm684, %v664
  %730 = vst.msk [vmem:[%s4 + $0x168] sm:$0xff] %vm684, %v665
  %731 = vst.msk [vmem:[%s4 + $0x170] sm:$0xff] %vm684, %v666
  %732 = vst.msk [vmem:[%s4 + $0x178] sm:$0xff] %vm684, %v667
  %733 = vst.msk [vmem:[%s4 + $0x180] sm:$0xff] %vm684, %v668
  %734 = vst.msk [vmem:[%s4 + $0x188] sm:$0xff] %vm684, %v669
  %735 = vst.msk [vmem:[%s4 + $0x190] sm:$0xff] %vm684, %v670
  %736 = vst.msk [vmem:[%s4 + $0x198] sm:$0xff] %vm684, %v671
  %737 = vst.msk [vmem:[%s4 + $0x1a0] sm:$0xff] %vm684, %v672
  %738 = vst.msk [vmem:[%s4 + $0x1a8] sm:$0xff] %vm684, %v673
  %739 = vst.msk [vmem:[%s4 + $0x1b0] sm:$0xff] %vm684, %v674
  %740 = vst.msk [vmem:[%s4 + $0x1b8] sm:$0xff] %vm684, %v675
  %741 = vst.msk [vmem:[%s4 + $0x1c0] sm:$0xff] %vm684, %v676
  %742 = vst.msk [vmem:[%s4 + $0x1c8] sm:$0xff] %vm684, %v677
  %743 = vst.msk [vmem:[%s4 + $0x1d0] sm:$0xff] %vm684, %v678
  %744 = vst.msk [vmem:[%s4 + $0x1d8] sm:$0xff] %vm684, %v679
  %745 = vst.msk [vmem:[%s4 + $0x1e0] sm:$0xff] %vm684, %v680
  %746 = vst.msk [vmem:[%s4 + $0x1e8] sm:$0xff] %vm684, %v681
  %747 = vst.msk [vmem:[%s4 + $0x1f0] sm:$0xff] %vm684, %v682
  %748 = vst.msk [vmem:[%s4 + $0x1f8] sm:$0xff] %vm684, %v683
  // Predicated region
  $region18: #{tpu_custom_call.1} parent=0 // pred_check
    _
  $region19: #{tpu_custom_call.1} parent=0 // pred_check_branch
    %750 = sbr.rel (0) target = $region21
  $region20: #{tpu_custom_call.1} parent=0 // pred_region
    _
  $region21: #{tpu_custom_call.1} parent=0 // pred_fallthru
    _
  // Predicated region
  $region22: #{tpu_custom_call.1} parent=0 // pred_check
    _
  $region23: #{tpu_custom_call.1} parent=0 // pred_check_branch
    %752 = sbr.rel (0) target = $region25
  $region24: #{tpu_custom_call.1} parent=0 // pred_region
    _
  $region25: #{tpu_custom_call.1} parent=0 // pred_fallthru
    _

</llo_original>
